<compile_context>
chip_gen: v6e
topology: v6e:2x2x1
jax: 0.10.0
libtpu: 0.0.40
codegen_flags: <defaults>
</compile_context>

<pallas_src>
import jax
import jax.numpy as jnp
from jax.experimental import pallas as pl
from jax.experimental.pallas import tpu as pltpu


def _dff_kernel(x_ref, s_ref, wx_ref, ws_ref, b_ref, o_ref):
    # Per grid step (b, t):
    #   x_ref, s_ref : (1, C, T)    channel-major spatial tile (lane dim = T)
    #   wx_ref       : (1, Cp, C)   rows 0..C-1 = W_redu[:, :C] * att_x (per batch)
    #                               row  C      = w1 (spatial-attention conv on x)
    #                               rows C+1..  = zero padding (Cp multiple of 8)
    #   ws_ref       : (1, Cp, C)   same, for the skip half (w2 in row C)
    #   b_ref        : (1,) f32 in SMEM  (b1 + b2)
    #   o_ref        : (1, C, T)
    xf = x_ref[0]                                                     # (C, T)
    sf = s_ref[0]                                                     # (C, T)

    # Fused matmuls: channel reduction + spatial-attention logits in one pass.
    acc = (jnp.dot(wx_ref[0], xf, preferred_element_type=jnp.float32)
           + jnp.dot(ws_ref[0], sf, preferred_element_type=jnp.float32))  # (Cp, T)

    C = o_ref.shape[1]
    att_sp = jax.nn.sigmoid(acc[C:C + 1, :] + b_ref[0])               # (1, T)
    o_ref[0] = (acc[:C, :] * att_sp).astype(o_ref.dtype)


def _round_up(n, m):
    return ((n + m - 1) // m) * m


def _pick_hw_tile(hw, target=2048):
    """Largest multiple of 128 that divides hw and is <= target; else hw."""
    best = None
    t = 128
    while t <= min(hw, target):
        if hw % t == 0:
            best = t
        t += 128
    return best if best is not None else hw


def dff_pallas(x_nchw, skip_nchw, params, *, compute_dtype=jnp.bfloat16,
               hw_tile_target=2048, out_dtype=None):
    """x_nchw, skip_nchw: (B, C, H, W). Returns (B, C, H, W)."""
    B, C, H, W = x_nchw.shape
    HW = H * W
    T = _pick_hw_tile(HW, hw_tile_target)
    n_t = HW // T
    out_dtype = x_nchw.dtype if out_dtype is None else out_dtype

    # NCHW -> (B, C, HW): channel-major, a free reshape (no transpose).
    # Cast once; the hoisted pooling reads the cast arrays so XLA fuses
    # cast + mean into a single pass over x / skip.
    xk = x_nchw.reshape(B, C, HW).astype(compute_dtype)
    sk = skip_nchw.reshape(B, C, HW).astype(compute_dtype)

    w_atten = params["w_atten"].astype(jnp.float32)    # (2C, 2C)  (out, in)
    w_redu = params["w_redu"].astype(jnp.float32)      # (C, 2C)
    w1 = params["w1"].astype(jnp.float32)              # (C,)
    b1 = params["b1"].astype(jnp.float32)              # ()
    w2 = params["w2"].astype(jnp.float32)              # (C,)
    b2 = params["b2"].astype(jnp.float32)              # ()

    # --- Pooled channel attention hoisted out of the kernel (O(B*C) work) ---
    pooled = jnp.concatenate(
        [jnp.mean(xk, axis=2, dtype=jnp.float32),
         jnp.mean(sk, axis=2, dtype=jnp.float32)], axis=1)            # (B, 2C)
    att_ch = jax.nn.sigmoid(pooled @ w_atten.T)                       # (B, 2C)

    # Fold the per-channel attention into the reduction weights per batch,
    # then append the spatial-attention conv row (unscaled) and pad rows to 8.
    wrx = w_redu[None, :, :C] * att_ch[:, None, :C]                   # (B, C, C)
    wrs = w_redu[None, :, C:] * att_ch[:, None, C:]                   # (B, C, C)
    w1_row = jnp.broadcast_to(w1.reshape(1, 1, C), (B, 1, C))
    w2_row = jnp.broadcast_to(w2.reshape(1, 1, C), (B, 1, C))
    wx = jnp.concatenate([wrx, w1_row], axis=1)                       # (B, C+1, C)
    ws = jnp.concatenate([wrs, w2_row], axis=1)
    Cp = _round_up(C + 1, 8)
    pad = Cp - (C + 1)
    if pad:
        wx = jnp.pad(wx, ((0, 0), (0, pad), (0, 0)))
        ws = jnp.pad(ws, ((0, 0), (0, pad), (0, 0)))
    wx = wx.astype(compute_dtype)                                     # (B, Cp, C)
    ws = ws.astype(compute_dtype)

    bias = (b1 + b2).reshape(1)                                       # SMEM scalar

    out = pl.pallas_call(
        _dff_kernel,
        out_shape=jax.ShapeDtypeStruct((B, C, HW), out_dtype),
        grid_spec=pltpu.PrefetchScalarGridSpec(
            num_scalar_prefetch=0,
            grid=(B, n_t),
            in_specs=[
                pl.BlockSpec((1, C, T), lambda b, t: (b, 0, t)),      # x tile
                pl.BlockSpec((1, C, T), lambda b, t: (b, 0, t)),      # skip tile
                pl.BlockSpec((1, Cp, C), lambda b, t: (b, 0, 0)),     # fused W (x half)
                pl.BlockSpec((1, Cp, C), lambda b, t: (b, 0, 0)),     # fused W (skip half)
                pl.BlockSpec(memory_space=pltpu.MemorySpace.SMEM),    # bias scalar
            ],
            out_specs=pl.BlockSpec((1, C, T), lambda b, t: (b, 0, t)),
        ),
        compiler_params=pltpu.CompilerParams(
            dimension_semantics=("parallel", "parallel"),
            vmem_limit_bytes=32 * 1024 * 1024,   # safe on v7x (64 MiB/TC)
        ),
    )(xk, sk, wx, ws, bias)

    return out.reshape(B, C, H, W)


def dff_reference(x, s, params):
    """Pure-JAX NCHW reference mirroring the PyTorch module."""
    out = jnp.concatenate([x, s], axis=1)                      # (B, 2C, H, W)
    pooled = jnp.mean(out, axis=(2, 3))                        # (B, 2C)
    att = jax.nn.sigmoid(pooled @ params["w_atten"].T)         # (B, 2C)
    out = out * att[:, :, None, None]
    out = jnp.einsum("oc,bchw->bohw", params["w_redu"], out)   # (B, C, H, W)
    att2 = (jnp.einsum("c,bchw->bhw", params["w1"], x) + params["b1"]
            + jnp.einsum("c,bchw->bhw", params["w2"], s) + params["b2"])
    att2 = jax.nn.sigmoid(att2)[:, None, :, :]                 # (B, 1, H, W)
    return out * att2


def init_params(key, dim):
    ks = jax.random.split(key, 6)
    scale = 0.2
    return {
        "w_atten": scale * jax.random.normal(ks[0], (2 * dim, 2 * dim), jnp.float32),
        "w_redu":  scale * jax.random.normal(ks[1], (dim, 2 * dim), jnp.float32),
        "w1":      scale * jax.random.normal(ks[2], (dim,), jnp.float32),
        "b1":      scale * jax.random.normal(ks[3], (), jnp.float32),
        "w2":      scale * jax.random.normal(ks[4], (dim,), jnp.float32),
        "b2":      scale * jax.random.normal(ks[5], (), jnp.float32),
    }


if __name__ == "__main__":
    key = jax.random.PRNGKey(0)
    kx, ks, kp = jax.random.split(key, 3)

    # Small shape consistent with the module (exact f32 compute path).
    B, C, H, W = 2, 4, 16, 16
    x = jax.random.normal(kx, (B, C, H, W), jnp.float32)
    skip = jax.random.normal(ks, (B, C, H, W), jnp.float32)
    params = init_params(kp, C)

    out = jax.block_until_ready(dff_pallas(x, skip, params,
                                           compute_dtype=jnp.float32))
    ref = dff_reference(x, skip, params)
    assert out.shape == (B, C, H, W)
    assert jnp.allclose(out, ref, atol=1e-5, rtol=1e-5), (
        float(jnp.max(jnp.abs(out - ref))))

    # Larger shape: exercises HW tiling, fused att-row matmul, f32 + bf16 paths.
    kx2, ks2, kp2 = jax.random.split(jax.random.PRNGKey(1), 3)
    B2, C2, H2, W2 = 2, 64, 32, 32
    x2 = jax.random.normal(kx2, (B2, C2, H2, W2), jnp.float32)
    skip2 = jax.random.normal(ks2, (B2, C2, H2, W2), jnp.float32)
    params2 = init_params(kp2, C2)
    ref2 = dff_reference(x2, skip2, params2)

    out2_f32 = jax.block_until_ready(
        dff_pallas(x2, skip2, params2, compute_dtype=jnp.float32))
    assert jnp.allclose(out2_f32, ref2, atol=1e-3, rtol=1e-3), (
        float(jnp.max(jnp.abs(out2_f32 - ref2))))

    out2_bf16 = jax.block_until_ready(dff_pallas(x2, skip2, params2))  # default bf16
    assert jnp.allclose(out2_bf16, ref2, atol=0.1, rtol=0.1), (
        float(jnp.max(jnp.abs(out2_bf16 - ref2))))

    print("KERNEL_OK")
</pallas_src>

<mosaic_0001>
module attributes {stable_mosaic.version = 11 : i64} {
  func.func @_dff_kernel(%arg0: i32, %arg1: i32, %arg2: memref<1x4x256xf32, #tpu.memory_space<vmem>>, %arg3: memref<1x4x256xf32, #tpu.memory_space<vmem>>, %arg4: memref<1x8x4xf32, #tpu.memory_space<vmem>>, %arg5: memref<1x8x4xf32, #tpu.memory_space<vmem>>, %arg6: memref<1xf32, #tpu.memory_space<smem>>, %arg7: memref<1x4x256xf32, #tpu.memory_space<vmem>>) attributes {dimension_semantics = [#tpu.dimension_semantics<parallel>, #tpu.dimension_semantics<parallel>], iteration_bounds = array<i64: 2, 1>, scalar_prefetch = 0 : i64, scratch_operands = 0 : i64, tpu.core_type = #tpu.core_type<tc>, window_params = [{transform_indices = @transform_0, window_bounds = array<i64: 1, 4, 256>}, {transform_indices = @transform_1, window_bounds = array<i64: 1, 4, 256>}, {transform_indices = @transform_2, window_bounds = array<i64: 1, 8, 4>}, {transform_indices = @transform_3, window_bounds = array<i64: 1, 8, 4>}, {transform_indices = @transform_4, window_bounds = array<i64: 1>}, {transform_indices = @transform_5, window_bounds = array<i64: 1, 4, 256>}]} {
    %c0 = arith.constant 0 : index
    %c0_0 = arith.constant 0 : index
    %c0_1 = arith.constant 0 : index
    %0 = vector.load %arg2[%c0, %c0_0, %c0_1] : memref<1x4x256xf32, #tpu.memory_space<vmem>>, vector<1x4x256xf32>
    %1 = vector.shape_cast %0 : vector<1x4x256xf32> to vector<4x256xf32>
    %c0_2 = arith.constant 0 : index
    %c0_3 = arith.constant 0 : index
    %c0_4 = arith.constant 0 : index
    %2 = vector.load %arg3[%c0_2, %c0_3, %c0_4] : memref<1x4x256xf32, #tpu.memory_space<vmem>>, vector<1x4x256xf32>
    %3 = vector.shape_cast %2 : vector<1x4x256xf32> to vector<4x256xf32>
    %c0_5 = arith.constant 0 : index
    %c0_6 = arith.constant 0 : index
    %c0_7 = arith.constant 0 : index
    %4 = vector.load %arg4[%c0_5, %c0_6, %c0_7] : memref<1x8x4xf32, #tpu.memory_space<vmem>>, vector<1x8x4xf32>
    %5 = vector.shape_cast %4 : vector<1x8x4xf32> to vector<8x4xf32>
    %cst = arith.constant dense<0.000000e+00> : vector<8x256xf32>
    %6 = tpu.matmul %5, %1, %cst {dimension_numbers = #tpu.dot_dimension_numbers<[1], [0], [0], [1], [0, 0, 1, 1], [], []>} : vector<8x4xf32>, vector<4x256xf32>, vector<8x256xf32> -> vector<8x256xf32>
    %c0_8 = arith.constant 0 : index
    %c0_9 = arith.constant 0 : index
    %c0_10 = arith.constant 0 : index
    %7 = vector.load %arg5[%c0_8, %c0_9, %c0_10] : memref<1x8x4xf32, #tpu.memory_space<vmem>>, vector<1x8x4xf32>
    %8 = vector.shape_cast %7 : vector<1x8x4xf32> to vector<8x4xf32>
    %cst_11 = arith.constant dense<0.000000e+00> : vector<8x256xf32>
    %9 = tpu.matmul %8, %3, %cst_11 {dimension_numbers = #tpu.dot_dimension_numbers<[1], [0], [0], [1], [0, 0, 1, 1], [], []>} : vector<8x4xf32>, vector<4x256xf32>, vector<8x256xf32> -> vector<8x256xf32>
    %10 = arith.addf %6, %9 : vector<8x256xf32>
    %11 = vector.extract_strided_slice %10 {offsets = [4, 0], sizes = [1, 256], strides = [1, 1]} : vector<8x256xf32> to vector<1x256xf32>
    %c0_12 = arith.constant 0 : index
    %12 = memref.load %arg6[%c0_12] : memref<1xf32, #tpu.memory_space<smem>>
    %13 = vector.broadcast %12 : f32 to vector<1x256xf32>
    %14 = arith.addf %11, %13 : vector<1x256xf32>
    %15 = arith.negf %14 : vector<1x256xf32>
    %16 = math.exp %15 : vector<1x256xf32>
    %cst_13 = arith.constant 1.000000e+00 : f32
    %17 = vector.broadcast %cst_13 : f32 to vector<1x256xf32>
    %18 = arith.addf %17, %16 : vector<1x256xf32>
    %19 = arith.divf %17, %18 : vector<1x256xf32>
    %20 = vector.extract_strided_slice %10 {offsets = [0, 0], sizes = [4, 256], strides = [1, 1]} : vector<8x256xf32> to vector<4x256xf32>
    %21 = vector.broadcast %19 : vector<1x256xf32> to vector<4x256xf32>
    %22 = arith.mulf %20, %21 : vector<4x256xf32>
    %c0_14 = arith.constant 0 : index
    %c0_15 = arith.constant 0 : index
    %c0_16 = arith.constant 0 : index
    %23 = vector.load %arg7[%c0_14, %c0_15, %c0_16] : memref<1x4x256xf32, #tpu.memory_space<vmem>>, vector<1x4x256xf32>
    %24 = vector.shape_cast %23 : vector<1x4x256xf32> to vector<4x256xf32>
    %25 = vector.shape_cast %22 : vector<4x256xf32> to vector<1x4x256xf32>
    tpu.vector_store %arg7[%c0_14, %c0_15, %c0_16], %25 {strides = array<i32>} : memref<1x4x256xf32, #tpu.memory_space<vmem>>, vector<1x4x256xf32>,
    return
  }
  func.func @transform_0(%arg0: i32, %arg1: i32) -> (i32, i32, i32) {
    %c0_i32 = arith.constant 0 : i32
    %c0_i32_0 = arith.constant 0 : i32
    return %arg0, %c0_i32, %arg1 : i32, i32, i32
  }
  func.func @transform_1(%arg0: i32, %arg1: i32) -> (i32, i32, i32) {
    %c0_i32 = arith.constant 0 : i32
    %c0_i32_0 = arith.constant 0 : i32
    return %arg0, %c0_i32, %arg1 : i32, i32, i32
  }
  func.func @transform_2(%arg0: i32, %arg1: i32) -> (i32, i32, i32) {
    %c0_i32 = arith.constant 0 : i32
    %c0_i32_0 = arith.constant 0 : i32
    %c0_i32_1 = arith.constant 0 : i32
    return %arg0, %c0_i32, %c0_i32_0 : i32, i32, i32
  }
  func.func @transform_3(%arg0: i32, %arg1: i32) -> (i32, i32, i32) {
    %c0_i32 = arith.constant 0 : i32
    %c0_i32_0 = arith.constant 0 : i32
    %c0_i32_1 = arith.constant 0 : i32
    return %arg0, %c0_i32, %c0_i32_0 : i32, i32, i32
  }
  func.func @transform_4(%arg0: i32, %arg1: i32) -> i32 {
    %c0_i32 = arith.constant 0 : i32
    %c0_i32_0 = arith.constant 0 : i32
    return %c0_i32 : i32
  }
  func.func @transform_5(%arg0: i32, %arg1: i32) -> (i32, i32, i32) {
    %c0_i32 = arith.constant 0 : i32
    %c0_i32_0 = arith.constant 0 : i32
    return %arg0, %c0_i32, %arg1 : i32, i32, i32
  }
}

</mosaic_0001>

<llo_original>
// kernel: tpu_custom_call.1
$region0: #{tpu_custom_call.1}
  #allocation0 [shape = 'u32[]', space=smem, size = 0x4, offset = 0x4, fixed_abs, tag = 'smem constant byte address 0x4 - core index']
  #allocation1 [shape = 'u32[144,128]{1,0:T(1,128)}', space=vmem, size = 0x12000, scoped, tag = 'internal scratch']
  #allocation2 [shape = 'f32[1]{0:T(128)S(6)}', space=smem, size = 0x200, scoped, tag = 'scoped memory for tpu_custom_call.1']
  %s0 = inlined_call_operand.vmem [shape: f32[2,4,256], index: 0, kind: input, shape index: {}]
  %s1 = inlined_call_operand.vmem [shape: f32[2,4,256], index: 1, kind: input, shape index: {}]
  %s2 = inlined_call_operand.vmem [shape: f32[2,8,4], index: 2, kind: input, shape index: {}]
  %s3 = inlined_call_operand.vmem [shape: f32[2,8,4], index: 3, kind: input, shape index: {}]
  %s4 = inlined_call_operand.<no memory space> [shape: f32[1], index: 4, kind: input, shape index: {}]
  %s5 = inlined_call_operand.hbm [shape: f32[2,4,256], index: 5, kind: output, shape index: {}]
  %s6 = sld [smem:[#allocation0]]
  $region53: #{tpu_custom_call.1} parent=0
    _
  %s8 = ssub.s32 1, %s6
  %s9 = scalar_select 0, %s8, %s6
  %10 = sst [smem:[#allocation2]] %s4
  $region1: #{tpu_custom_call.1} parent=0
    #allocation3 [shape = 'u8[8192]{0}', space=vmem, size = 0x2000, scoped, tag = 'output window, operand 0']
    #allocation4 [shape = 's32[2]{0}', space=sflag, size = 0x8, scoped, tag = 'scoped memory for tpu_custom_call.1']
    %11 = vsyncpa [#allocation4], 0
    %s12 = scalar_lea.sflag [#allocation4], 1
    %13 = vsyncpa %s12, 0
    loop: start=0, step=1, limit=4
    $region2: #{tpu_custom_call.1} parent=1 // loop_pre_header
      _
    $region3: #{tpu_custom_call.1} parent=1 // loop_header
      %s15 = sphi 0, %s19
      %p16 = scmp.ge.s32.totalorder %s15, 4
      %s22 = sphi 0, %s34
      %s23 = sphi 0, %s30
      %s24 = sphi 0, %s22
      %s25 = sphi 0, %s23
      %s26 = sphi 0, %s24
      %s27 = sphi 0, %s25
      %s39 = sphi 0, %s41
      %s42 = sphi 0, %s39
      %s43 = sphi 0, %s42
      %s59 = sphi 0, %s43
      %s67 = sphi 0, %s69
      %s70 = sphi 0, %s67
      %s71 = sphi 0, %s70
      %s87 = sphi 0, %s71
      %s93 = sphi 0, %s95
      %s96 = sphi 0, %s93
      %s97 = sphi 0, %s96
      %s113 = sphi 0, %s97
      %s119 = sphi 0, %s121
      %s122 = sphi 0, %s119
      %s123 = sphi 0, %s122
      %s139 = sphi 0, %s123
      %s143 = sphi 0, %s143
      %s145 = sphi 0, %s143
      %s146 = sphi 0, %s145
      %s160 = sphi 0, %s146
      %s168 = sphi 0, %s170
      %s171 = sphi 0, %s168
      %s172 = sphi 0, %s171
      %s188 = sphi 0, %s172
    $region4: #{tpu_custom_call.1} parent=1 // loop_header_branch
      %18 = sbr.rel (%p16) target = $region8
    $region5: #{tpu_custom_call.1} parent=1 // loop_body
      %s20 = ssub.s32 %s15, 1
      %s21 = ssub.s32 %s15, 2
      %s28 = sadd.s32 1, %s23
      %p29 = scmp.ge.s32.totalorder %s28, 1
      %s30 = scalar_select %p29, 0, %s28
      %s31 = sadd.s32 1, %s22
      %s32 = scalar_select %p29, %s31, %s22
      %p33 = scmp.ge.s32.totalorder %s32, 2
      %s34 = scalar_select %p33, 0, %s32
      %s35 = ssub.s32 %s22, %s34
      %s36 = ssub.s32 %s23, %s30
      %s37 = sor.u32 %s35, %s36
      %p38 = scmp.eq.s32.totalorder %s37, 0
      %s40 = sadd.s32 %s39, 1
      %s41 = scalar_select %p38, %s39, %s40
      %p44 = pneg %p38
      %p45 = scmp.eq.s32.totalorder %s15, 1
      %p46 = por %p44, %p45
      %p47 = scmp.ne.s32.totalorder %s39, %s42
      %p48 = scmp.eq.s32.totalorder %s15, 0
      %p49 = por %p47, %p48
      %p50 = scmp.ne.s32.totalorder %s39, %s42
      %p51 = scmp.eq.s32.totalorder %s20, 1
      %p52 = por %p50, %p51
      %p53 = scmp.ne.s32.totalorder %s42, %s43
      %p54 = scmp.eq.s32.totalorder %s20, 0
      %p55 = por %p53, %p54
      %p56 = scmp.ne.s32.totalorder %s42, %s43
      %p57 = scmp.eq.s32.totalorder %s21, 1
      %p58 = por %p56, %p57
      %p60 = scmp.ne.s32.totalorder %s43, %s59
      %p61 = scmp.eq.s32.totalorder %s21, 0
      %p62 = por %p60, %p61
      %s63 = ssub.s32 %s22, %s34
      %s64 = ssub.s32 %s23, %s30
      %s65 = sor.u32 %s63, %s64
      %p66 = scmp.eq.s32.totalorder %s65, 0
      %s68 = sadd.s32 %s67, 1
      %s69 = scalar_select %p66, %s67, %s68
      %p72 = pneg %p66
      %p73 = scmp.eq.s32.totalorder %s15, 1
      %p74 = por %p72, %p73
      %p75 = scmp.ne.s32.totalorder %s67, %s70
      %p76 = scmp.eq.s32.totalorder %s15, 0
      %p77 = por %p75, %p76
      %p78 = scmp.ne.s32.totalorder %s67, %s70
      %p79 = scmp.eq.s32.totalorder %s20, 1
      %p80 = por %p78, %p79
      %p81 = scmp.ne.s32.totalorder %s70, %s71
      %p82 = scmp.eq.s32.totalorder %s20, 0
      %p83 = por %p81, %p82
      %p84 = scmp.ne.s32.totalorder %s70, %s71
      %p85 = scmp.eq.s32.totalorder %s21, 1
      %p86 = por %p84, %p85
      %p88 = scmp.ne.s32.totalorder %s71, %s87
      %p89 = scmp.eq.s32.totalorder %s21, 0
      %p90 = por %p88, %p89
      %s91 = ssub.s32 %s22, %s34
      %p92 = scmp.eq.s32.totalorder %s91, 0
      %s94 = sadd.s32 %s93, 1
      %s95 = scalar_select %p92, %s93, %s94
      %p98 = pneg %p92
      %p99 = scmp.eq.s32.totalorder %s15, 1
      %p100 = por %p98, %p99
      %p101 = scmp.ne.s32.totalorder %s93, %s96
      %p102 = scmp.eq.s32.totalorder %s15, 0
      %p103 = por %p101, %p102
      %p104 = scmp.ne.s32.totalorder %s93, %s96
      %p105 = scmp.eq.s32.totalorder %s20, 1
      %p106 = por %p104, %p105
      %p107 = scmp.ne.s32.totalorder %s96, %s97
      %p108 = scmp.eq.s32.totalorder %s20, 0
      %p109 = por %p107, %p108
      %p110 = scmp.ne.s32.totalorder %s96, %s97
      %p111 = scmp.eq.s32.totalorder %s21, 1
      %p112 = por %p110, %p111
      %p114 = scmp.ne.s32.totalorder %s97, %s113
      %p115 = scmp.eq.s32.totalorder %s21, 0
      %p116 = por %p114, %p115
      %s117 = ssub.s32 %s22, %s34
      %p118 = scmp.eq.s32.totalorder %s117, 0
      %s120 = sadd.s32 %s119, 1
      %s121 = scalar_select %p118, %s119, %s120
      %p124 = pneg %p118
      %p125 = scmp.eq.s32.totalorder %s15, 1
      %p126 = por %p124, %p125
      %p127 = scmp.ne.s32.totalorder %s119, %s122
      %p128 = scmp.eq.s32.totalorder %s15, 0
      %p129 = por %p127, %p128
      %p130 = scmp.ne.s32.totalorder %s119, %s122
      %p131 = scmp.eq.s32.totalorder %s20, 1
      %p132 = por %p130, %p131
      %p133 = scmp.ne.s32.totalorder %s122, %s123
      %p134 = scmp.eq.s32.totalorder %s20, 0
      %p135 = por %p133, %p134
      %p136 = scmp.ne.s32.totalorder %s122, %s123
      %p137 = scmp.eq.s32.totalorder %s21, 1
      %p138 = por %p136, %p137
      %p140 = scmp.ne.s32.totalorder %s123, %s139
      %p141 = scmp.eq.s32.totalorder %s21, 0
      %p142 = por %p140, %p141
      %s144 = sadd.s32 %s143, 1
      %p147 = scmp.eq.s32.totalorder %s15, 1
      %p148 = scmp.ne.s32.totalorder %s143, %s145
      %p149 = scmp.eq.s32.totalorder %s15, 0
      %p150 = por %p148, %p149
      %p151 = scmp.ne.s32.totalorder %s143, %s145
      %p152 = scmp.eq.s32.totalorder %s20, 1
      %p153 = por %p151, %p152
      %p154 = scmp.ne.s32.totalorder %s145, %s146
      %p155 = scmp.eq.s32.totalorder %s20, 0
      %p156 = por %p154, %p155
      %p157 = scmp.ne.s32.totalorder %s145, %s146
      %p158 = scmp.eq.s32.totalorder %s21, 1
      %p159 = por %p157, %p158
      %p161 = scmp.ne.s32.totalorder %s146, %s160
      %p162 = scmp.eq.s32.totalorder %s21, 0
      %p163 = por %p161, %p162
      %s164 = ssub.s32 %s22, %s34
      %s165 = ssub.s32 %s23, %s30
      %s166 = sor.u32 %s164, %s165
      %p167 = scmp.eq.s32.totalorder %s166, 0
      %s169 = sadd.s32 %s168, 1
      %s170 = scalar_select %p167, %s168, %s169
      %p173 = pneg %p167
      %p174 = scmp.eq.s32.totalorder %s15, 1
      %p175 = por %p173, %p174
      %p176 = scmp.ne.s32.totalorder %s168, %s171
      %p177 = scmp.eq.s32.totalorder %s15, 0
      %p178 = por %p176, %p177
      %p179 = scmp.ne.s32.totalorder %s168, %s171
      %p180 = scmp.eq.s32.totalorder %s20, 1
      %p181 = por %p179, %p180
      %p182 = scmp.ne.s32.totalorder %s171, %s172
      %p183 = scmp.eq.s32.totalorder %s20, 0
      %p184 = por %p182, %p183
      %p185 = scmp.ne.s32.totalorder %s171, %s172
      %p186 = scmp.eq.s32.totalorder %s21, 1
      %p187 = por %p185, %p186
      %p189 = scmp.ne.s32.totalorder %s172, %s188
      %p190 = scmp.eq.s32.totalorder %s21, 0
      %p191 = por %p189, %p190
      %p192 = scmp.le.s32.totalorder 1, %s15
      %p193 = scmp.lt.s32.totalorder %s15, 3
      %p194 = pnand %p192, %p193
      %p195 = pneg %p194
      // Predicated region
      $region9: #{tpu_custom_call.1} parent=5 // pred_check
        _
      $region10: #{tpu_custom_call.1} parent=5 // pred_check_branch
        %197 = sbr.rel (%p194) target = $region12
      $region11: #{tpu_custom_call.1} parent=5 // pred_region
        %s198 = ssub.s32 %s15, 1
        // Predicated region
        $region13: #{tpu_custom_call.1} parent=11 // pred_check
          %p199 = pneg %p156
        $region14: #{tpu_custom_call.1} parent=11 // pred_check_branch
          %201 = sbr.rel (%p199) target = $region16
        $region15: #{tpu_custom_call.1} parent=11 // pred_region
          _
        $region16: #{tpu_custom_call.1} parent=11 // pred_fallthru
          _
      $region12: #{tpu_custom_call.1} parent=5 // pred_fallthru
        _
      %p202 = scmp.lt.s32.totalorder %s15, 2
      // Predicated region
      $region17: #{tpu_custom_call.1} parent=5 // pred_check
        %p203 = pneg %p202
      $region18: #{tpu_custom_call.1} parent=5 // pred_check_branch
        %205 = sbr.rel (%p203) target = $region20
      $region19: #{tpu_custom_call.1} parent=5 // pred_region
        // Predicated region
        $region21: #{tpu_custom_call.1} parent=19 // pred_check
          %p206 = pneg %p49
        $region22: #{tpu_custom_call.1} parent=19 // pred_check_branch
          %208 = sbr.rel (%p206) target = $region24
        $region23: #{tpu_custom_call.1} parent=19 // pred_region
          %s209 = smul.u32 2, %s23
          %p210 = scmp.lt.s32.totalorder %s22, 1
          %s211 = scalar_select %p210, %s22, 1
          %p212 = scmp.lt.s32.totalorder %s209, 1
          %s213 = scalar_select %p212, %s209, 1
          %s214 = smul.addr %s211, 2
          %s215 = sadd.s32 %s213, %s214
          %s216 = smul.addr %s215, 4
          %s217 = scalar_lea.vmem %s0, %s216
          %s218 = smul.u32 2, %s23
        $region24: #{tpu_custom_call.1} parent=19 // pred_fallthru
          _
        // Predicated region
        $region25: #{tpu_custom_call.1} parent=19 // pred_check
          %p219 = pneg %p77
        $region26: #{tpu_custom_call.1} parent=19 // pred_check_branch
          %221 = sbr.rel (%p219) target = $region28
        $region27: #{tpu_custom_call.1} parent=19 // pred_region
          %s222 = smul.u32 2, %s23
          %p223 = scmp.lt.s32.totalorder %s22, 1
          %s224 = scalar_select %p223, %s22, 1
          %p225 = scmp.lt.s32.totalorder %s222, 1
          %s226 = scalar_select %p225, %s222, 1
          %s227 = smul.addr %s224, 2
          %s228 = sadd.s32 %s226, %s227
          %s229 = smul.addr %s228, 4
          %s230 = scalar_lea.vmem %s1, %s229
          %s231 = smul.u32 2, %s23
        $region28: #{tpu_custom_call.1} parent=19 // pred_fallthru
          _
        // Predicated region
        $region29: #{tpu_custom_call.1} parent=19 // pred_check
          %p232 = pneg %p103
        $region30: #{tpu_custom_call.1} parent=19 // pred_check_branch
          %234 = sbr.rel (%p232) target = $region32
        $region31: #{tpu_custom_call.1} parent=19 // pred_region
          %p235 = scmp.lt.s32.totalorder %s22, 1
          %s236 = scalar_select %p235, %s22, 1
          %s237 = smul.addr %s236, 8
          %s238 = scalar_lea.vmem %s2, %s237
        $region32: #{tpu_custom_call.1} parent=19 // pred_fallthru
          _
        // Predicated region
        $region33: #{tpu_custom_call.1} parent=19 // pred_check
          %p239 = pneg %p129
        $region34: #{tpu_custom_call.1} parent=19 // pred_check_branch
          %241 = sbr.rel (%p239) target = $region36
        $region35: #{tpu_custom_call.1} parent=19 // pred_region
          %p242 = scmp.lt.s32.totalorder %s22, 1
          %s243 = scalar_select %p242, %s22, 1
          %s244 = smul.addr %s243, 8
          %s245 = scalar_lea.vmem %s3, %s244
        $region36: #{tpu_custom_call.1} parent=19 // pred_fallthru
          _
      $region20: #{tpu_custom_call.1} parent=5 // pred_fallthru
        _
      %p246 = scmp.le.s32.totalorder 1, %s15
      %p247 = scmp.lt.s32.totalorder %s15, 3
      %p248 = pnand %p246, %p247
      %p249 = pneg %p248
      // Predicated region
      $region37: #{tpu_custom_call.1} parent=5 // pred_check
        _
      $region38: #{tpu_custom_call.1} parent=5 // pred_check_branch
        %251 = sbr.rel (%p248) target = $region40
      $region39: #{tpu_custom_call.1} parent=5 // pred_region
        %s252 = ssub.s32 %s15, 1
        %s253 = smul.u32 2, %s25
        %p254 = scmp.lt.s32.totalorder %s24, 1
        %s255 = scalar_select %p254, %s24, 1
        %p256 = scmp.lt.s32.totalorder %s253, 1
        %s257 = scalar_select %p256, %s253, 1
        %s258 = smul.addr %s255, 2
        %s259 = sadd.s32 %s257, %s258
        %s260 = smul.addr %s259, 4
        %s261 = scalar_lea.vmem %s0, %s260
        %p262 = pneg %p55
        %p263 = pneg %p52
        %s264 = smul.u32 2, %s25
        %p265 = scmp.lt.s32.totalorder %s24, 1
        %s266 = scalar_select %p265, %s24, 1
        %p267 = scmp.lt.s32.totalorder %s264, 1
        %s268 = scalar_select %p267, %s264, 1
        %s269 = smul.addr %s266, 2
        %s270 = sadd.s32 %s268, %s269
        %s271 = smul.addr %s270, 4
        %s272 = scalar_lea.vmem %s1, %s271
        %p273 = pneg %p83
        %p274 = pneg %p80
        %p275 = scmp.lt.s32.totalorder %s24, 1
        %s276 = scalar_select %p275, %s24, 1
        %s277 = smul.addr %s276, 8
        %s278 = scalar_lea.vmem %s2, %s277
        %p279 = pneg %p109
        %p280 = pneg %p106
        %p281 = scmp.lt.s32.totalorder %s24, 1
        %s282 = scalar_select %p281, %s24, 1
        %s283 = smul.addr %s282, 8
        %s284 = scalar_lea.vmem %s3, %s283
        %p285 = pneg %p135
        %p286 = pneg %p132
        %p287 = pneg %p156
        %p288 = pneg %p153
        %p289 = pneg %p184
        %p290 = pneg %p181
        %s291 = sand.u32 %s171, 1
        %s292 = scalar_lea.sflag [#allocation4], %s291
        %s293 = sand.u32 %s171, 1
        %s294 = smul.addr %s293, 8
        %s295 = scalar_lea.vmem [#allocation3], %s294
        %s296 = smul.u32 2, %s25
        %p297 = scmp.lt.s32.totalorder %s24, 1
        %s298 = scalar_select %p297, %s24, 1
        %p299 = scmp.lt.s32.totalorder %s296, 1
        %s300 = scalar_select %p299, %s296, 1
        %s301 = smul.addr %s298, 2
        %s302 = sadd.s32 %s300, %s301
        %s303 = smul.addr %s302, 4
        %s304 = scalar_lea.vmem %s0, %s303
        %s305 = smul.u32 2, %s25
        %s306 = smul.u32 2, %s25
        %p307 = scmp.lt.s32.totalorder %s24, 1
        %s308 = scalar_select %p307, %s24, 1
        %p309 = scmp.lt.s32.totalorder %s306, 1
        %s310 = scalar_select %p309, %s306, 1
        %s311 = smul.addr %s308, 2
        %s312 = sadd.s32 %s310, %s311
        %s313 = smul.addr %s312, 4
        %s314 = scalar_lea.vmem %s1, %s313
        %s315 = smul.u32 2, %s25
        %p316 = scmp.lt.s32.totalorder %s24, 1
        %s317 = scalar_select %p316, %s24, 1
        %s318 = smul.addr %s317, 8
        %s319 = scalar_lea.vmem %s2, %s318
        %p320 = scmp.lt.s32.totalorder %s24, 1
        %s321 = scalar_select %p320, %s24, 1
        %s322 = smul.addr %s321, 8
        %s323 = scalar_lea.vmem %s3, %s322
        %s324 = smul.u32 2, %s25
        %v325 = vld [vmem:[%s304] sm:$0xff]
        %v326 = vld [vmem:[%s314] sm:$0xff]
        %v327 = vld [vmem:[%s319] sm:$0xff]
        %v328 = vld [vmem:[%s323] sm:$0xff]
        %v330 = vcombine.high %v326, %v326
        %vm331 = vcmask 31744
        %v333 = vsel %vm331, %v328, 0
        %vm335 = vcmask 1043456
        %v336 = vsel %vm335, %v326, 0
        %v338 = vsel %vm335, %v330, 0
        %340 = vmatprep.subr.mxu0 0.0
        %341 = vmatpush1.msra.mxu0 0.0
        %342 = vmatprep.subr.mxu0 0.0
        %343 = vmatpush1.msra.mxu0 0.0
        %344 = vmatprep.subr.mxu0 0.0
        %345 = vmatpush1.msra.mxu0 0.0
        %346 = vmatprep.subr.mxu0 0.0
        %347 = vmatpush1.msra.mxu0 0.0
        %348 = vmatprep.subr.mxu0 0.0
        %349 = vmatpush1.msra.mxu0 0.0
        %350 = vmatprep.subr.mxu0 0.0
        %351 = vmatpush1.msra.mxu0 0.0
        %352 = vmatprep.subr.mxu0 0.0
        %353 = vmatpush1.msra.mxu0 0.0
        %354 = vmatprep.subr.mxu0 0.0
        %355 = vmatpush1.msra.mxu0 0.0
        %356 = vmatprep.subr.mxu0 0.0
        %357 = vmatpush1.msra.mxu0 0.0
        %358 = vmatprep.subr.mxu0 0.0
        %359 = vmatpush1.msra.mxu0 0.0
        %360 = vmatprep.subr.mxu0 0.0
        %361 = vmatpush1.msra.mxu0 0.0
        %362 = vmatprep.subr.mxu0 0.0
        %363 = vmatpush1.msra.mxu0 0.0
        %364 = vmatprep.subr.mxu0 0.0
        %365 = vmatpush1.msra.mxu0 0.0
        %366 = vmatprep.subr.mxu0 0.0
        %367 = vmatpush1.msra.mxu0 0.0
        %368 = vmatprep.subr.mxu0 0.0
        %369 = vmatpush1.msra.mxu0 0.0
        %370 = vmatprep.subr.mxu0 %v338
        %371 = vmatpush1.msra.mxu0 %v336
        %372 = vmatprep.subr.mxu0 0.0
        %373 = vmatpush2.msra.mxu0 0.0
        %374 = vmatprep.subr.mxu0 0.0
        %375 = vmatpush2.msra.mxu0 0.0
        %376 = vmatprep.subr.mxu0 0.0
        %377 = vmatpush2.msra.mxu0 0.0
        %378 = vmatprep.subr.mxu0 0.0
        %379 = vmatpush2.msra.mxu0 0.0
        %380 = vmatprep.subr.mxu0 0.0
        %381 = vmatpush2.msra.mxu0 0.0
        %382 = vmatprep.subr.mxu0 0.0
        %383 = vmatpush2.msra.mxu0 0.0
        %384 = vmatprep.subr.mxu0 0.0
        %385 = vmatpush2.msra.mxu0 0.0
        %386 = vmatprep.subr.mxu0 0.0
        %387 = vmatpush2.msra.mxu0 0.0
        %388 = vmatprep.subr.mxu0 0.0
        %389 = vmatpush2.msra.mxu0 0.0
        %390 = vmatprep.subr.mxu0 0.0
        %391 = vmatpush2.msra.mxu0 0.0
        %392 = vmatprep.subr.mxu0 0.0
        %393 = vmatpush2.msra.mxu0 0.0
        %394 = vmatprep.subr.mxu0 0.0
        %395 = vmatpush2.msra.mxu0 0.0
        %396 = vmatprep.subr.mxu0 0.0
        %397 = vmatpush2.msra.mxu0 0.0
        %398 = vmatprep.subr.mxu0 0.0
        %399 = vmatpush2.msra.mxu0 0.0
        %400 = vmatprep.subr.mxu0 0.0
        %401 = vmatpush2.msra.mxu0 0.0
        %402 = vmatprep.subr.mxu0 0.0
        %403 = vmatpush2.msra.mxu0 0.0
        %404 = vmatprep.mubr.f32.mxu0 0.0
        %405 = vmatmul.mubr.f32.gmra.mxu0 %v333
        %v406 = vpop.f32.mrf.mxu0
        %v407 = vadd.f32 0.0, %v406
        %v408 = vpop.f32.mrf.mxu0
        %v409 = vadd.f32 0.0, %v408
        %410 = vdwg.mxu0
        %v412 = vcombine.high %v325, %v325
        %v414 = vsel %vm331, %v327, 0
        %v416 = vsel %vm335, %v325, 0
        %v418 = vsel %vm335, %v412, 0
        %420 = vmatprep.subr.mxu0 0.0
        %421 = vmatpush1.msra.mxu0 0.0
        %422 = vmatprep.subr.mxu0 0.0
        %423 = vmatpush1.msra.mxu0 0.0
        %424 = vmatprep.subr.mxu0 0.0
        %425 = vmatpush1.msra.mxu0 0.0
        %426 = vmatprep.subr.mxu0 0.0
        %427 = vmatpush1.msra.mxu0 0.0
        %428 = vmatprep.subr.mxu0 0.0
        %429 = vmatpush1.msra.mxu0 0.0
        %430 = vmatprep.subr.mxu0 0.0
        %431 = vmatpush1.msra.mxu0 0.0
        %432 = vmatprep.subr.mxu0 0.0
        %433 = vmatpush1.msra.mxu0 0.0
        %434 = vmatprep.subr.mxu0 0.0
        %435 = vmatpush1.msra.mxu0 0.0
        %436 = vmatprep.subr.mxu0 0.0
        %437 = vmatpush1.msra.mxu0 0.0
        %438 = vmatprep.subr.mxu0 0.0
        %439 = vmatpush1.msra.mxu0 0.0
        %440 = vmatprep.subr.mxu0 0.0
        %441 = vmatpush1.msra.mxu0 0.0
        %442 = vmatprep.subr.mxu0 0.0
        %443 = vmatpush1.msra.mxu0 0.0
        %444 = vmatprep.subr.mxu0 0.0
        %445 = vmatpush1.msra.mxu0 0.0
        %446 = vmatprep.subr.mxu0 0.0
        %447 = vmatpush1.msra.mxu0 0.0
        %448 = vmatprep.subr.mxu0 0.0
        %449 = vmatpush1.msra.mxu0 0.0
        %450 = vmatprep.subr.mxu0 %v418
        %451 = vmatpush1.msra.mxu0 %v416
        %452 = vmatprep.subr.mxu0 0.0
        %453 = vmatpush2.msra.mxu0 0.0
        %454 = vmatprep.subr.mxu0 0.0
        %455 = vmatpush2.msra.mxu0 0.0
        %456 = vmatprep.subr.mxu0 0.0
        %457 = vmatpush2.msra.mxu0 0.0
        %458 = vmatprep.subr.mxu0 0.0
        %459 = vmatpush2.msra.mxu0 0.0
        %460 = vmatprep.subr.mxu0 0.0
        %461 = vmatpush2.msra.mxu0 0.0
        %462 = vmatprep.subr.mxu0 0.0
        %463 = vmatpush2.msra.mxu0 0.0
        %464 = vmatprep.subr.mxu0 0.0
        %465 = vmatpush2.msra.mxu0 0.0
        %466 = vmatprep.subr.mxu0 0.0
        %467 = vmatpush2.msra.mxu0 0.0
        %468 = vmatprep.subr.mxu0 0.0
        %469 = vmatpush2.msra.mxu0 0.0
        %470 = vmatprep.subr.mxu0 0.0
        %471 = vmatpush2.msra.mxu0 0.0
        %472 = vmatprep.subr.mxu0 0.0
        %473 = vmatpush2.msra.mxu0 0.0
        %474 = vmatprep.subr.mxu0 0.0
        %475 = vmatpush2.msra.mxu0 0.0
        %476 = vmatprep.subr.mxu0 0.0
        %477 = vmatpush2.msra.mxu0 0.0
        %478 = vmatprep.subr.mxu0 0.0
        %479 = vmatpush2.msra.mxu0 0.0
        %480 = vmatprep.subr.mxu0 0.0
        %481 = vmatpush2.msra.mxu0 0.0
        %482 = vmatprep.subr.mxu0 0.0
        %483 = vmatpush2.msra.mxu0 0.0
        %484 = vmatprep.mubr.f32.mxu0 0.0
        %485 = vmatmul.mubr.f32.gmra.mxu0 %v414
        %v486 = vpop.f32.mrf.mxu0
        %v487 = vadd.f32 %v407, %v486
        %v488 = vpop.f32.mrf.mxu0
        %v489 = vadd.f32 %v409, %v488
        %490 = vdwg.mxu0
        %s491 = sld [smem:[#allocation2]]
        %v492 = vstv %s491
        %v493 = vadd.f32 %v487, %v492
        %v494 = vadd.f32 %v489, %v492
        %v495 = vxor.u32 %v493, 2147483648
        %v496 = vxor.u32 %v494, 2147483648
        %v497 = vmul.f32 %v495, 1.442695
        %v498 = vpow.pop %v497
        %v499 = vmul.f32 %v496, 1.442695
        %v500 = vpow.pop %v499
        %v501 = vadd.f32 %v498, 1.0
        %v502 = vadd.f32 %v500, 1.0
        %v503 = vrcp.pop %v501
        %v504 = vmul.f32 1.0, %v503
        %v505 = vrcp.pop %v502
        %v506 = vmul.f32 1.0, %v505
        %v507 = vlaneseq
        %v508 = vshrl.u32 %v507, 7
        %v509 = vsub.s32 4, %v508
        %v510 = vrot.slane %v504, %v509
        %v511 = vlaneseq
        %v512 = vshrl.u32 %v511, 7
        %v513 = vsub.s32 4, %v512
        %v514 = vrot.slane %v506, %v513
        %v515 = vmul.f32 %v487, %v510
        %v516 = vmul.f32 %v489, %v514
        %v519 = vcombine.low %v515, %v516
        %521 = vst [vmem:[%s295] sm:$0xff] %v519
        %s522 = sand.u32 %s171, 1
        %s523 = scalar_lea.sflag [#allocation4], %s522
        %s524 = sand.u32 %s171, 1
        %s525 = smul.addr %s524, 8
        %s526 = scalar_lea.vmem [#allocation3], %s525
        // Predicated region
        $region41: #{tpu_custom_call.1} parent=39 // pred_check
          %p527 = pneg %p181
        $region42: #{tpu_custom_call.1} parent=39 // pred_check_branch
          %529 = sbr.rel (%p527) target = $region44
        $region43: #{tpu_custom_call.1} parent=39 // pred_region
          %s530 = smul.u32 2, %s25
          %s532 = ssub.s32 128, 128
          %533 = vsyncadd %s523, %s532
          %s534 = smul.addr %s24, 2
          %s535 = sadd.s32 %s530, %s534
          %s536 = smul.addr %s535, 64
          %s537 = scalar_lea.hbm %s5, %s536
          %s539 = sshll.u32 %s526, 4
          %s540 = int_to_ptr.vmem [resolvable:$true] %s539
          %542 = dma.vmem_to_hbm [thread:$0]  %s540, 128, %s537, %s523
        $region44: #{tpu_custom_call.1} parent=39 // pred_fallthru
          _
      $region40: #{tpu_custom_call.1} parent=5 // pred_fallthru
        _
      %p543 = scmp.le.s32.totalorder 2, %s15
      // Predicated region
      $region45: #{tpu_custom_call.1} parent=5 // pred_check
        %p544 = pneg %p543
      $region46: #{tpu_custom_call.1} parent=5 // pred_check_branch
        %546 = sbr.rel (%p544) target = $region48
      $region47: #{tpu_custom_call.1} parent=5 // pred_region
        %s547 = ssub.s32 %s15, 2
        // Predicated region
        $region49: #{tpu_custom_call.1} parent=47 // pred_check
          %p548 = pneg %p187
        $region50: #{tpu_custom_call.1} parent=47 // pred_check_branch
          %550 = sbr.rel (%p548) target = $region52
        $region51: #{tpu_custom_call.1} parent=47 // pred_region
          %s551 = sand.u32 %s172, 1
          %s552 = scalar_lea.sflag [#allocation4], %s551
          %s553 = sand.u32 %s172, 1
          %s554 = smul.addr %s553, 8
          %s555 = scalar_lea.vmem [#allocation3], %s554
          %556 = dma.done %s552, 128
        $region52: #{tpu_custom_call.1} parent=47 // pred_fallthru
          _
      $region48: #{tpu_custom_call.1} parent=5 // pred_fallthru
        _
    $region6: #{tpu_custom_call.1} parent=1 // loop_footer
      %s19 = sadd.s32 1, %s15
    $region7: #{tpu_custom_call.1} parent=1 // loop_footer_branch
      %14 = sbr.rel target = $region3
    $region8: #{tpu_custom_call.1} parent=1 // loop_exit
      _
    %557 = vsyncpa [#allocation4], 1
    %s558 = scalar_lea.sflag [#allocation4], 1
    %559 = vsyncpa %s558, 1

</llo_original>
